<compile_context>
chip_gen: v6e
topology: v6e:2x2x1
jax: 0.10.0
libtpu: 0.0.40
codegen_flags: <defaults>
</compile_context>

<pallas_src>
import jax
import jax.numpy as jnp
from jax.experimental import pallas as pl
from jax.experimental.pallas import tpu as pltpu

# ---- constants standing in for SFS / AHP / AS -------------------------------
NUM_AGENT_FEATURES = 10          # SFS.num_agent_features
NUM_TEAM_FEATURES = 6            # SFS.num_team_features
NUM_GAME_FEATURES = 12           # SFS.num_game_features
NUM_ACTION_TYPES = 8             # AS.num_action_types
ORIG_32 = 32                     # AHP.original_32
ORIG_16 = 16                     # AHP.original_16
ORIG_8 = 8                       # AHP.original_8
ORIG_64 = 64                     # AHP.original_64
SCALAR_FC1_INPUT = ORIG_32 + ORIG_16 + ORIG_8 + ORIG_8   # 64

NUM_SCALAR_FEATURES = NUM_AGENT_FEATURES + NUM_TEAM_FEATURES + NUM_GAME_FEATURES  # 28

IN_LANES = 128                   # lane-dense packed input width (36 real cols + pad)
HIDDEN = SCALAR_FC1_INPUT        # 64 (branch-concat width)
OUT_LANES = 128                  # lane-dense padded output width (64 real + 64 pad)


# ---- Pallas kernel -----------------------------------------------------------
def scalar_encoder_kernel(x_ref, w_branch_ref, b_branch_ref,
                          w_fc1_ref, b_fc1_ref, out_ref):
    # Fused branch layers: relu(x_cat @ block_diag(W_agent,W_team,W_game,W_aa) + b)
    h = jnp.dot(x_ref[...], w_branch_ref[...],
                preferred_element_type=jnp.float32)             # [TB, 64] f32 acc
    h = jnp.maximum(h + b_branch_ref[...], 0.0)                 # bias+ReLU in f32

    # fc_1 (output zero-padded to 128 lanes => unmasked vector stores)
    y = jnp.dot(h.astype(w_fc1_ref.dtype), w_fc1_ref[...],
                preferred_element_type=jnp.float32)             # [TB, 128]
    y = jnp.maximum(y + b_fc1_ref[...], 0.0)
    out_ref[...] = y.astype(out_ref.dtype)


# ---- parameter packing (block-diagonal branch weights, padded fc1) -----------
def _pack_params(params, compute_dtype):
    f32 = jnp.float32
    w_branch = jnp.zeros((IN_LANES, HIDDEN), f32)
    r = c = 0
    for wk, n_in, n_out in (("w_agent", NUM_AGENT_FEATURES, ORIG_32),
                            ("w_team", NUM_TEAM_FEATURES, ORIG_16),
                            ("w_game", NUM_GAME_FEATURES, ORIG_8),
                            ("w_aa", NUM_ACTION_TYPES, ORIG_8)):
        w_branch = w_branch.at[r:r + n_in, c:c + n_out].set(params[wk].astype(f32))
        r += n_in
        c += n_out
    b_branch = jnp.concatenate(
        [params["b_agent"], params["b_team"], params["b_game"], params["b_aa"]],
        axis=1).astype(f32)                                     # [1, 64]
    w_fc1p = jnp.pad(params["w_fc1"].astype(f32),
                     ((0, 0), (0, OUT_LANES - ORIG_64)))        # [64, 128]
    b_fc1p = jnp.pad(params["b_fc1"].astype(f32),
                     ((0, 0), (0, OUT_LANES - ORIG_64)))        # [1, 128]
    # biases stay f32 (added after f32 accumulation); weights use compute dtype
    return (w_branch.astype(compute_dtype), b_branch,
            w_fc1p.astype(compute_dtype), b_fc1p)


# ---- wrapper -----------------------------------------------------------------
def scalar_encoder_forward(scalar_tensor, available_actions, params,
                           *, compute_dtype=jnp.bfloat16, block_rows=1024):
    B = scalar_tensor.shape[0]

    # Lane-dense packed input slab: [agent | team | game | aa] padded to 128 lanes.
    aa = available_actions[:, :NUM_ACTION_TYPES]
    x_cat = jnp.concatenate([scalar_tensor, aa], axis=1).astype(jnp.float32)  # [B, 36]
    x_cat = jnp.pad(x_cat, ((0, 0), (0, IN_LANES - x_cat.shape[1])))          # [B, 128]

    # Batch tiling: one block if small, otherwise pad B to a multiple of block_rows.
    if B <= block_rows:
        tb = B
        b_pad = B
    else:
        tb = block_rows
        b_pad = pl.cdiv(B, tb) * tb
        x_cat = jnp.pad(x_cat, ((0, b_pad - B), (0, 0)))
    grid = (b_pad // tb,)

    x_cat = x_cat.astype(compute_dtype)
    w_branch, b_branch, w_fc1p, b_fc1p = _pack_params(params, compute_dtype)

    out_padded = pl.pallas_call(
        scalar_encoder_kernel,
        out_shape=jax.ShapeDtypeStruct((b_pad, OUT_LANES), jnp.float32),
        grid=grid,
        in_specs=[
            pl.BlockSpec((tb, IN_LANES), lambda i: (i, 0)),       # batch-tiled input
            pl.BlockSpec((IN_LANES, HIDDEN), lambda i: (0, 0)),   # resident weights
            pl.BlockSpec((1, HIDDEN), lambda i: (0, 0)),
            pl.BlockSpec((HIDDEN, OUT_LANES), lambda i: (0, 0)),
            pl.BlockSpec((1, OUT_LANES), lambda i: (0, 0)),
        ],
        out_specs=pl.BlockSpec((tb, OUT_LANES), lambda i: (i, 0)),
        compiler_params=pltpu.CompilerParams(
            dimension_semantics=("parallel",)),
    )(x_cat, w_branch, b_branch, w_fc1p, b_fc1p)

    return out_padded[:B, :ORIG_64]


# ---- deterministic parameter init (PyTorch-Linear-style uniform) -------------
def init_linear(key, fan_in, fan_out):
    kw, kb = jax.random.split(key)
    bound = 1.0 / jnp.sqrt(jnp.float32(fan_in))
    # stored transposed: [in, out]
    w = jax.random.uniform(kw, (fan_in, fan_out), jnp.float32, -bound, bound)
    b = jax.random.uniform(kb, (1, fan_out), jnp.float32, -bound, bound)
    return w, b


def init_params(key):
    ks = jax.random.split(key, 5)
    w_agent, b_agent = init_linear(ks[0], NUM_AGENT_FEATURES, ORIG_32)
    w_game, b_game = init_linear(ks[1], NUM_GAME_FEATURES, ORIG_8)
    w_team, b_team = init_linear(ks[2], NUM_TEAM_FEATURES, ORIG_16)
    w_aa, b_aa = init_linear(ks[3], NUM_ACTION_TYPES, ORIG_8)
    w_fc1, b_fc1 = init_linear(ks[4], SCALAR_FC1_INPUT, ORIG_64)
    return dict(w_agent=w_agent, b_agent=b_agent,
                w_team=w_team, b_team=b_team,
                w_game=w_game, b_game=b_game,
                w_aa=w_aa, b_aa=b_aa,
                w_fc1=w_fc1, b_fc1=b_fc1)


# ---- pure-JAX reference ------------------------------------------------------
def scalar_encoder_ref(scalar_tensor, available_actions, p):
    agent = scalar_tensor[:, :NUM_AGENT_FEATURES]
    team = scalar_tensor[:, NUM_AGENT_FEATURES:NUM_AGENT_FEATURES + NUM_TEAM_FEATURES]
    game = scalar_tensor[:, NUM_AGENT_FEATURES + NUM_TEAM_FEATURES:]
    aa = available_actions[:, :NUM_ACTION_TYPES]
    relu = lambda z: jnp.maximum(z, 0.0)
    x1 = relu(agent @ p["w_agent"] + p["b_agent"])
    x2 = relu(team @ p["w_team"] + p["b_team"])
    x3 = relu(game @ p["w_game"] + p["b_game"])
    x4 = relu(aa @ p["w_aa"] + p["b_aa"])
    cat = jnp.concatenate([x1, x2, x3, x4], axis=1)
    return relu(cat @ p["w_fc1"] + p["b_fc1"])


if __name__ == "__main__":
    key = jax.random.PRNGKey(0)
    k_params, k_scalar, k_avail = jax.random.split(key, 3)

    B = 2
    params = init_params(k_params)
    scalar_tensor = jax.random.normal(k_scalar, (B, NUM_SCALAR_FEATURES), jnp.float32)
    # available_actions may carry extra columns; forward only uses the first 8.
    available_actions = (jax.random.uniform(k_avail, (B, NUM_ACTION_TYPES + 4)) > 0.5
                         ).astype(jnp.float32)
    ref = scalar_encoder_ref(scalar_tensor, available_actions, params)

    # exact f32 compute path
    out_f32 = jax.block_until_ready(
        scalar_encoder_forward(scalar_tensor, available_actions, params,
                               compute_dtype=jnp.float32))
    assert out_f32.shape == (B, ORIG_64)
    assert jnp.allclose(out_f32, ref, atol=1e-5, rtol=1e-5), "f32 mismatch vs reference"

    # bf16 compute path (f32 MXU accumulation) -> looser tolerance
    out_bf16 = jax.block_until_ready(
        scalar_encoder_forward(scalar_tensor, available_actions, params,
                               compute_dtype=jnp.bfloat16))
    assert out_bf16.shape == (B, ORIG_64)
    assert jnp.allclose(out_bf16, ref, atol=5e-2, rtol=5e-2), "bf16 mismatch vs reference"

    # multi-tile grid path (exercises batch padding + pipelined grid), still small
    B2 = 20
    k2s, k2a = jax.random.split(jax.random.PRNGKey(1))
    st2 = jax.random.normal(k2s, (B2, NUM_SCALAR_FEATURES), jnp.float32)
    av2 = (jax.random.uniform(k2a, (B2, NUM_ACTION_TYPES + 4)) > 0.5).astype(jnp.float32)
    out2 = jax.block_until_ready(
        scalar_encoder_forward(st2, av2, params,
                               compute_dtype=jnp.float32, block_rows=16))
    ref2 = scalar_encoder_ref(st2, av2, params)
    assert out2.shape == (B2, ORIG_64)
    assert jnp.allclose(out2, ref2, atol=1e-5, rtol=1e-5), "tiled mismatch vs reference"

    print("KERNEL_OK")
</pallas_src>

<mosaic_0001>
module attributes {stable_mosaic.version = 11 : i64} {
  func.func @scalar_encoder_kernel(%arg0: i32, %arg1: memref<2x128xf32, #tpu.memory_space<vmem>>, %arg2: memref<128x64xf32, #tpu.memory_space<vmem>>, %arg3: memref<1x64xf32, #tpu.memory_space<vmem>>, %arg4: memref<64x128xf32, #tpu.memory_space<vmem>>, %arg5: memref<1x128xf32, #tpu.memory_space<vmem>>, %arg6: memref<2x128xf32, #tpu.memory_space<vmem>>) attributes {dimension_semantics = [#tpu.dimension_semantics<parallel>], iteration_bounds = array<i64: 1>, scalar_prefetch = 0 : i64, scratch_operands = 0 : i64, tpu.core_type = #tpu.core_type<tc>, window_params = [{transform_indices = @transform_0, window_bounds = array<i64: 2, 128>}, {pipeline_mode = #tpu.pipeline_mode<synchronous>, transform_indices = @transform_1, window_bounds = array<i64: 128, 64>}, {pipeline_mode = #tpu.pipeline_mode<synchronous>, transform_indices = @transform_2, window_bounds = array<i64: 1, 64>}, {pipeline_mode = #tpu.pipeline_mode<synchronous>, transform_indices = @transform_3, window_bounds = array<i64: 64, 128>}, {pipeline_mode = #tpu.pipeline_mode<synchronous>, transform_indices = @transform_4, window_bounds = array<i64: 1, 128>}, {transform_indices = @transform_5, window_bounds = array<i64: 2, 128>}]} {
    %c0 = arith.constant 0 : index
    %c0_0 = arith.constant 0 : index
    %0 = vector.load %arg1[%c0, %c0_0] : memref<2x128xf32, #tpu.memory_space<vmem>>, vector<2x128xf32>
    %c0_1 = arith.constant 0 : index
    %c0_2 = arith.constant 0 : index
    %1 = vector.load %arg2[%c0_1, %c0_2] : memref<128x64xf32, #tpu.memory_space<vmem>>, vector<128x64xf32>
    %cst = arith.constant dense<0.000000e+00> : vector<2x64xf32>
    %2 = tpu.matmul %0, %1, %cst {dimension_numbers = #tpu.dot_dimension_numbers<[1], [0], [0], [1], [0, 0, 1, 1], [], []>} : vector<2x128xf32>, vector<128x64xf32>, vector<2x64xf32> -> vector<2x64xf32>
    %c0_3 = arith.constant 0 : index
    %c0_4 = arith.constant 0 : index
    %3 = vector.load %arg3[%c0_3, %c0_4] : memref<1x64xf32, #tpu.memory_space<vmem>>, vector<1x64xf32>
    %4 = vector.broadcast %3 : vector<1x64xf32> to vector<2x64xf32>
    %5 = arith.addf %2, %4 : vector<2x64xf32>
    %cst_5 = arith.constant 0.000000e+00 : f32
    %6 = vector.broadcast %cst_5 : f32 to vector<2x64xf32>
    %7 = arith.maximumf %5, %6 : vector<2x64xf32>
    %c0_6 = arith.constant 0 : index
    %c0_7 = arith.constant 0 : index
    %8 = vector.load %arg4[%c0_6, %c0_7] : memref<64x128xf32, #tpu.memory_space<vmem>>, vector<64x128xf32>
    %cst_8 = arith.constant dense<0.000000e+00> : vector<2x128xf32>
    %9 = tpu.matmul %7, %8, %cst_8 {dimension_numbers = #tpu.dot_dimension_numbers<[1], [0], [0], [1], [0, 0, 1, 1], [], []>} : vector<2x64xf32>, vector<64x128xf32>, vector<2x128xf32> -> vector<2x128xf32>
    %c0_9 = arith.constant 0 : index
    %c0_10 = arith.constant 0 : index
    %10 = vector.load %arg5[%c0_9, %c0_10] : memref<1x128xf32, #tpu.memory_space<vmem>>, vector<1x128xf32>
    %11 = vector.broadcast %10 : vector<1x128xf32> to vector<2x128xf32>
    %12 = arith.addf %9, %11 : vector<2x128xf32>
    %cst_11 = arith.constant 0.000000e+00 : f32
    %13 = vector.broadcast %cst_11 : f32 to vector<2x128xf32>
    %14 = arith.maximumf %12, %13 : vector<2x128xf32>
    %c0_12 = arith.constant 0 : index
    %c0_13 = arith.constant 0 : index
    %15 = vector.load %arg6[%c0_12, %c0_13] : memref<2x128xf32, #tpu.memory_space<vmem>>, vector<2x128xf32>
    tpu.vector_store %arg6[%c0_12, %c0_13], %14 {strides = array<i32>} : memref<2x128xf32, #tpu.memory_space<vmem>>, vector<2x128xf32>,
    return
  }
  func.func @transform_0(%arg0: i32) -> (i32, i32) {
    %c0_i32 = arith.constant 0 : i32
    %c0_i32_0 = arith.constant 0 : i32
    return %arg0, %c0_i32 : i32, i32
  }
  func.func @transform_1(%arg0: i32) -> (i32, i32) {
    %c0_i32 = arith.constant 0 : i32
    %c0_i32_0 = arith.constant 0 : i32
    %c0_i32_1 = arith.constant 0 : i32
    return %c0_i32, %c0_i32_0 : i32, i32
  }
  func.func @transform_2(%arg0: i32) -> (i32, i32) {
    %c0_i32 = arith.constant 0 : i32
    %c0_i32_0 = arith.constant 0 : i32
    %c0_i32_1 = arith.constant 0 : i32
    return %c0_i32, %c0_i32_0 : i32, i32
  }
  func.func @transform_3(%arg0: i32) -> (i32, i32) {
    %c0_i32 = arith.constant 0 : i32
    %c0_i32_0 = arith.constant 0 : i32
    %c0_i32_1 = arith.constant 0 : i32
    return %c0_i32, %c0_i32_0 : i32, i32
  }
  func.func @transform_4(%arg0: i32) -> (i32, i32) {
    %c0_i32 = arith.constant 0 : i32
    %c0_i32_0 = arith.constant 0 : i32
    %c0_i32_1 = arith.constant 0 : i32
    return %c0_i32, %c0_i32_0 : i32, i32
  }
  func.func @transform_5(%arg0: i32) -> (i32, i32) {
    %c0_i32 = arith.constant 0 : i32
    %c0_i32_0 = arith.constant 0 : i32
    return %arg0, %c0_i32 : i32, i32
  }
}

</mosaic_0001>

<llo_original>
// kernel: tpu_custom_call.1
$region0: #{tpu_custom_call.1}
  #allocation0 [shape = 'u32[]', space=smem, size = 0x4, offset = 0x4, fixed_abs, tag = 'smem constant byte address 0x4 - core index']
  #allocation1 [shape = 'u32[144,128]{1,0:T(1,128)}', space=vmem, size = 0x12000, scoped, tag = 'internal scratch']
  %s0 = inlined_call_operand.vmem [shape: f32[2,128], index: 0, kind: input, shape index: {}]
  %s1 = inlined_call_operand.vmem [shape: f32[128,64], index: 1, kind: input, shape index: {}]
  %s2 = inlined_call_operand.vmem [shape: f32[1,64], index: 2, kind: input, shape index: {}]
  %s3 = inlined_call_operand.vmem [shape: f32[64,128], index: 3, kind: input, shape index: {}]
  %s4 = inlined_call_operand.vmem [shape: f32[1,128], index: 4, kind: input, shape index: {}]
  %s5 = inlined_call_operand.hbm [shape: f32[2,128], index: 5, kind: output, shape index: {}]
  %s6 = sld [smem:[#allocation0]]
  $region30: #{tpu_custom_call.1} parent=0
    _
  %s8 = ssub.s32 1, %s6
  %s9 = scalar_select 0, %s8, %s6
  $region1: #{tpu_custom_call.1} parent=0
    #allocation2 [shape = 'u8[1024]{0}', space=vmem, size = 0x400, scoped, tag = 'output window, operand 0, single buffered']
    #allocation3 [shape = 's32[1]{0}', space=sflag, size = 0x4, scoped, tag = 'scoped memory for tpu_custom_call.1']
    %10 = vsyncpa [#allocation3], 0
    // Predicated region
    $region2: #{tpu_custom_call.1} parent=1 // pred_check
      _
    $region3: #{tpu_custom_call.1} parent=1 // pred_check_branch
      %12 = sbr.rel (0) target = $region5
    $region4: #{tpu_custom_call.1} parent=1 // pred_region
      _
    $region5: #{tpu_custom_call.1} parent=1 // pred_fallthru
      _
    // Predicated region
    $region6: #{tpu_custom_call.1} parent=1 // pred_check
      _
    $region7: #{tpu_custom_call.1} parent=1 // pred_check_branch
      %14 = sbr.rel (0) target = $region9
    $region8: #{tpu_custom_call.1} parent=1 // pred_region
      _
    $region9: #{tpu_custom_call.1} parent=1 // pred_fallthru
      _
    // Predicated region
    $region10: #{tpu_custom_call.1} parent=1 // pred_check
      _
    $region11: #{tpu_custom_call.1} parent=1 // pred_check_branch
      %16 = sbr.rel (0) target = $region13
    $region12: #{tpu_custom_call.1} parent=1 // pred_region
      _
    $region13: #{tpu_custom_call.1} parent=1 // pred_fallthru
      _
    // Predicated region
    $region14: #{tpu_custom_call.1} parent=1 // pred_check
      _
    $region15: #{tpu_custom_call.1} parent=1 // pred_check_branch
      %18 = sbr.rel (0) target = $region17
    $region16: #{tpu_custom_call.1} parent=1 // pred_region
      _
    $region17: #{tpu_custom_call.1} parent=1 // pred_fallthru
      _
    // Predicated region
    $region18: #{tpu_custom_call.1} parent=1 // pred_check
      _
    $region19: #{tpu_custom_call.1} parent=1 // pred_check_branch
      %20 = sbr.rel (0) target = $region21
    $region20: #{tpu_custom_call.1} parent=1 // pred_region
      _
    $region21: #{tpu_custom_call.1} parent=1 // pred_fallthru
      _
    %v21 = vld [vmem:[%s0] sm:$0x3]
    %v22 = vld [vmem:[%s1] sm:$0xff]
    %v23 = vld [vmem:[%s1 + $0x8] sm:$0xff]
    %v24 = vld [vmem:[%s1 + $0x10] sm:$0xff]
    %v25 = vld [vmem:[%s1 + $0x18] sm:$0xff]
    %v26 = vld [vmem:[%s1 + $0x20] sm:$0xff]
    %v27 = vld [vmem:[%s1 + $0x28] sm:$0xff]
    %v28 = vld [vmem:[%s1 + $0x30] sm:$0xff]
    %v29 = vld [vmem:[%s1 + $0x38] sm:$0xff]
    %v30 = vld [vmem:[%s1 + $0x40] sm:$0xff]
    %v31 = vld [vmem:[%s1 + $0x48] sm:$0xff]
    %v32 = vld [vmem:[%s1 + $0x50] sm:$0xff]
    %v33 = vld [vmem:[%s1 + $0x58] sm:$0xff]
    %v34 = vld [vmem:[%s1 + $0x60] sm:$0xff]
    %v35 = vld [vmem:[%s1 + $0x68] sm:$0xff]
    %v36 = vld [vmem:[%s1 + $0x70] sm:$0xff]
    %v37 = vld [vmem:[%s1 + $0x78] sm:$0xff]
    %v38 = vld [vmem:[%s2] sm:$0x1]
    %v40 = vlaneseq
    %v41 = vshrl.u32 %v40, 7
    %v42 = vsub.s32 0, %v41
    %v43 = vrot.slane %v38, %v42
    %45 = vmatprep.subr.mxu0 0.0
    %46 = vmatpush1.msra.mxu0 %v37
    %47 = vmatprep.subr.mxu0 0.0
    %48 = vmatpush1.msra.mxu0 %v36
    %49 = vmatprep.subr.mxu0 0.0
    %50 = vmatpush1.msra.mxu0 %v35
    %51 = vmatprep.subr.mxu0 0.0
    %52 = vmatpush1.msra.mxu0 %v34
    %53 = vmatprep.subr.mxu0 0.0
    %54 = vmatpush1.msra.mxu0 %v33
    %55 = vmatprep.subr.mxu0 0.0
    %56 = vmatpush1.msra.mxu0 %v32
    %57 = vmatprep.subr.mxu0 0.0
    %58 = vmatpush1.msra.mxu0 %v31
    %59 = vmatprep.subr.mxu0 0.0
    %60 = vmatpush1.msra.mxu0 %v30
    %61 = vmatprep.subr.mxu0 0.0
    %62 = vmatpush1.msra.mxu0 %v29
    %63 = vmatprep.subr.mxu0 0.0
    %64 = vmatpush1.msra.mxu0 %v28
    %65 = vmatprep.subr.mxu0 0.0
    %66 = vmatpush1.msra.mxu0 %v27
    %67 = vmatprep.subr.mxu0 0.0
    %68 = vmatpush1.msra.mxu0 %v26
    %69 = vmatprep.subr.mxu0 0.0
    %70 = vmatpush1.msra.mxu0 %v25
    %71 = vmatprep.subr.mxu0 0.0
    %72 = vmatpush1.msra.mxu0 %v24
    %73 = vmatprep.subr.mxu0 0.0
    %74 = vmatpush1.msra.mxu0 %v23
    %75 = vmatprep.subr.mxu0 0.0
    %76 = vmatpush1.msra.mxu0 %v22
    %77 = vmatprep.subr.mxu0 0.0
    %78 = vmatpush2.msra.mxu0 0.0
    %79 = vmatprep.subr.mxu0 0.0
    %80 = vmatpush2.msra.mxu0 0.0
    %81 = vmatprep.subr.mxu0 0.0
    %82 = vmatpush2.msra.mxu0 0.0
    %83 = vmatprep.subr.mxu0 0.0
    %84 = vmatpush2.msra.mxu0 0.0
    %85 = vmatprep.subr.mxu0 0.0
    %86 = vmatpush2.msra.mxu0 0.0
    %87 = vmatprep.subr.mxu0 0.0
    %88 = vmatpush2.msra.mxu0 0.0
    %89 = vmatprep.subr.mxu0 0.0
    %90 = vmatpush2.msra.mxu0 0.0
    %91 = vmatprep.subr.mxu0 0.0
    %92 = vmatpush2.msra.mxu0 0.0
    %93 = vmatprep.subr.mxu0 0.0
    %94 = vmatpush2.msra.mxu0 0.0
    %95 = vmatprep.subr.mxu0 0.0
    %96 = vmatpush2.msra.mxu0 0.0
    %97 = vmatprep.subr.mxu0 0.0
    %98 = vmatpush2.msra.mxu0 0.0
    %99 = vmatprep.subr.mxu0 0.0
    %100 = vmatpush2.msra.mxu0 0.0
    %101 = vmatprep.subr.mxu0 0.0
    %102 = vmatpush2.msra.mxu0 0.0
    %103 = vmatprep.subr.mxu0 0.0
    %104 = vmatpush2.msra.mxu0 0.0
    %105 = vmatprep.subr.mxu0 0.0
    %106 = vmatpush2.msra.mxu0 0.0
    %107 = vmatprep.subr.mxu0 0.0
    %108 = vmatpush2.msra.mxu0 0.0
    %109 = vmatprep.mubr.f32.mxu0 0.0
    %110 = vmatmul.mubr.f32.gmra.mxu0 %v21
    %v111 = vpop.f32.mrf.mxu0
    %v112 = vadd.f32 %v43, %v111
    %v113 = vpop.f32.mrf.mxu0
    %114 = vdwg.mxu0
    %v115 = vmax.f32 %v112, 0.0
    %v116 = vld [vmem:[%s3] sm:$0xff]
    %v117 = vld [vmem:[%s3 + $0x8] sm:$0xff]
    %v118 = vld [vmem:[%s3 + $0x10] sm:$0xff]
    %v119 = vld [vmem:[%s3 + $0x18] sm:$0xff]
    %v120 = vld [vmem:[%s3 + $0x20] sm:$0xff]
    %v121 = vld [vmem:[%s3 + $0x28] sm:$0xff]
    %v122 = vld [vmem:[%s3 + $0x30] sm:$0xff]
    %v123 = vld [vmem:[%s3 + $0x38] sm:$0xff]
    %v124 = vld [vmem:[%s4] sm:$0x1]
    %v126 = vlaneseq
    %v127 = vshrl.u32 %v126, 7
    %v128 = vsub.s32 0, %v127
    %v129 = vrot.slane %v124, %v128
    %vm131 = vcmask 523264
    %v133 = vsel %vm131, %v115, 0
    %135 = vmatprep.subr.mxu0 0.0
    %136 = vmatpush1.msra.mxu0 0.0
    %137 = vmatprep.subr.mxu0 0.0
    %138 = vmatpush1.msra.mxu0 0.0
    %139 = vmatprep.subr.mxu0 0.0
    %140 = vmatpush1.msra.mxu0 0.0
    %141 = vmatprep.subr.mxu0 0.0
    %142 = vmatpush1.msra.mxu0 0.0
    %143 = vmatprep.subr.mxu0 0.0
    %144 = vmatpush1.msra.mxu0 0.0
    %145 = vmatprep.subr.mxu0 0.0
    %146 = vmatpush1.msra.mxu0 0.0
    %147 = vmatprep.subr.mxu0 0.0
    %148 = vmatpush1.msra.mxu0 0.0
    %149 = vmatprep.subr.mxu0 0.0
    %150 = vmatpush1.msra.mxu0 0.0
    %151 = vmatprep.subr.mxu0 0.0
    %152 = vmatpush1.msra.mxu0 %v123
    %153 = vmatprep.subr.mxu0 0.0
    %154 = vmatpush1.msra.mxu0 %v122
    %155 = vmatprep.subr.mxu0 0.0
    %156 = vmatpush1.msra.mxu0 %v121
    %157 = vmatprep.subr.mxu0 0.0
    %158 = vmatpush1.msra.mxu0 %v120
    %159 = vmatprep.subr.mxu0 0.0
    %160 = vmatpush1.msra.mxu0 %v119
    %161 = vmatprep.subr.mxu0 0.0
    %162 = vmatpush1.msra.mxu0 %v118
    %163 = vmatprep.subr.mxu0 0.0
    %164 = vmatpush1.msra.mxu0 %v117
    %165 = vmatprep.subr.mxu0 0.0
    %166 = vmatpush1.msra.mxu0 %v116
    %167 = vmatprep.subr.mxu0 0.0
    %168 = vmatpush2.msra.mxu0 0.0
    %169 = vmatprep.subr.mxu0 0.0
    %170 = vmatpush2.msra.mxu0 0.0
    %171 = vmatprep.subr.mxu0 0.0
    %172 = vmatpush2.msra.mxu0 0.0
    %173 = vmatprep.subr.mxu0 0.0
    %174 = vmatpush2.msra.mxu0 0.0
    %175 = vmatprep.subr.mxu0 0.0
    %176 = vmatpush2.msra.mxu0 0.0
    %177 = vmatprep.subr.mxu0 0.0
    %178 = vmatpush2.msra.mxu0 0.0
    %179 = vmatprep.subr.mxu0 0.0
    %180 = vmatpush2.msra.mxu0 0.0
    %181 = vmatprep.subr.mxu0 0.0
    %182 = vmatpush2.msra.mxu0 0.0
    %183 = vmatprep.subr.mxu0 0.0
    %184 = vmatpush2.msra.mxu0 0.0
    %185 = vmatprep.subr.mxu0 0.0
    %186 = vmatpush2.msra.mxu0 0.0
    %187 = vmatprep.subr.mxu0 0.0
    %188 = vmatpush2.msra.mxu0 0.0
    %189 = vmatprep.subr.mxu0 0.0
    %190 = vmatpush2.msra.mxu0 0.0
    %191 = vmatprep.subr.mxu0 0.0
    %192 = vmatpush2.msra.mxu0 0.0
    %193 = vmatprep.subr.mxu0 0.0
    %194 = vmatpush2.msra.mxu0 0.0
    %195 = vmatprep.subr.mxu0 0.0
    %196 = vmatpush2.msra.mxu0 0.0
    %197 = vmatprep.subr.mxu0 0.0
    %198 = vmatpush2.msra.mxu0 0.0
    %199 = vmatprep.mubr.f32.mxu0 0.0
    %200 = vmatmul.mubr.f32.gmra.mxu0 %v133
    %v201 = vpop.f32.mrf.mxu0
    %v202 = vadd.f32 %v129, %v201
    %v203 = vpop.f32.mrf.mxu0
    %204 = vdwg.mxu0
    %v205 = vmax.f32 %v202, 0.0
    %206 = vst [vmem:[#allocation2] sm:$0x3] %v205
    // Predicated region
    $region22: #{tpu_custom_call.1} parent=1 // pred_check
      _
    $region23: #{tpu_custom_call.1} parent=1 // pred_check_branch
      %208 = sbr.rel (0) target = $region25
    $region24: #{tpu_custom_call.1} parent=1 // pred_region
      %s210 = ssub.s32 32, 32
      %211 = vsyncadd [#allocation3], %s210
      %s213 = sshll.u32 [#allocation2], 4
      %s214 = int_to_ptr.vmem [resolvable:$true] %s213
      %216 = dma.vmem_to_hbm [thread:$0]  %s214, 32, %s5, [#allocation3]
    $region25: #{tpu_custom_call.1} parent=1 // pred_fallthru
      _
    // Predicated region
    $region26: #{tpu_custom_call.1} parent=1 // pred_check
      _
    $region27: #{tpu_custom_call.1} parent=1 // pred_check_branch
      %218 = sbr.rel (0) target = $region29
    $region28: #{tpu_custom_call.1} parent=1 // pred_region
      %219 = dma.done [#allocation3], 32
    $region29: #{tpu_custom_call.1} parent=1 // pred_fallthru
      _
    %220 = vsyncpa [#allocation3], 1

</llo_original>
